<compile_context>
chip_gen: v7x
topology: tpu7x:2x2x1
jax: 0.10.0
libtpu: 0.0.40
codegen_flags: <defaults>
</compile_context>

<pallas_src>
import functools

import jax
import jax.numpy as jnp
from jax.experimental import pallas as pl
from jax.experimental.pallas import tpu as pltpu


LANES = 128  # TPU vreg lane width


def _sublane_multiple(dtype):
    # Minimum second-to-last tile dim by dtype width (f32: 8, bf16: 16, int8/fp8: 32).
    return {4: 8, 2: 16, 1: 32}.get(jnp.dtype(dtype).itemsize, 8)


def _pick_pack(C):
    # Pack `pack` logical rows side-by-side on the 128-lane axis when C divides 128.
    # NOTE: if C does not divide 128 (e.g. C=96) this degrades to pack=1, which is
    # correct but uses masked sub-128-lane stores and is noticeably slower.
    return LANES // C if (C < LANES and LANES % C == 0) else 1


def se_kernel(x_ref, w1_ref, w2_ref, o_ref):
    # x_ref:  (tm, Cp)  lane-dense row tile (Cp = pack*C)
    # w1_ref: (Cp, Hp)  block-diagonal W1^T, resident (constant block index)
    # w2_ref: (Hp, Cp)  block-diagonal W2^T, resident
    x = x_ref[...]  # keep native dtype; MXU handles bf16/f32, accumulate in f32

    # fc[0] + fc[1]: Linear(C -> H, bias=False) + ReLU
    h = jnp.dot(x, w1_ref[...], preferred_element_type=jnp.float32)
    h = jnp.maximum(h, 0.0)

    # fc[2] + fc[3]: Linear(H -> C, bias=False) + Sigmoid
    z = jnp.dot(h, w2_ref[...], preferred_element_type=jnp.float32)
    # sigmoid(z) = 0.5 * tanh(z/2) + 0.5  — tanh runs on the EUP slot, no VPU divide
    y = 0.5 * jnp.tanh(0.5 * z) + 0.5

    # x * y.expand_as(x): y already has x's exact lane layout.  Cast the gate down
    # first so bf16 inputs don't promote the whole tile to f32 in the epilogue.
    o_ref[...] = (x * y.astype(x.dtype)).astype(o_ref.dtype)


def prepare_se_weights(w1, w2, dtype, pack):
    """Transpose + block-diagonalize the two Linear weights.

    Call ONCE per model (or let jit constant-fold it); keeps the few-KiB weight
    prep off the per-invocation hot path.
      w1: (H, C)  first nn.Linear weight (PyTorch (out, in) layout), H = C // reduction
      w2: (C, H)  second nn.Linear weight
    Returns (w1p, w2p) of shapes (pack*C, pack*H) and (pack*H, pack*C).
    """
    w1t = jnp.transpose(w1).astype(dtype)   # (C, H)
    w2t = jnp.transpose(w2).astype(dtype)   # (H, C)
    if pack > 1:
        eye = jnp.eye(pack, dtype=dtype)
        return jnp.kron(eye, w1t), jnp.kron(eye, w2t)
    return w1t, w2t


def se_layer_packed(x, w1p, w2p, pack, *, tm=2048):
    """SELayer forward with pre-packed weights.

    x:    (B, S, C) channels-last activations (f32 or bf16)
    w1p:  (pack*C, pack*H) block-diagonal W1^T from prepare_se_weights
    w2p:  (pack*H, pack*C) block-diagonal W2^T from prepare_se_weights
    pack: LANES // C (or 1)
    tm:   packed-row tile; memory-bound, so bigger amortizes the ~0.35 us/step cost.
          Default 2048 fits all generations; sweep 2048-4096 on v6e/v7x.
    """
    B, S, C = x.shape
    M = B * S
    dtype = x.dtype
    Cp = pack * C
    Hp = w1p.shape[1]

    x2d = x.reshape(M, C)
    rem = M % pack
    if rem:
        # TODO(synk): rare ragged-pack tail (M not a multiple of pack) still costs one
        # pad copy of x; split into a packed main call + tiny pack=1 tail call if this
        # path ever matters.  The common path below is copy-free.
        x2d = jnp.pad(x2d, ((0, pack - rem), (0, 0)))
    Mp = x2d.shape[0] // pack
    xp = x2d.reshape(Mp, Cp)   # contiguous reshape: free, no data movement

    sub = _sublane_multiple(dtype)
    # Cap the tile so the grid has >= 2 steps when there is enough work (keeps both
    # v7x TensorCores busy); round to the dtype's sublane multiple.
    tm_cap = pl.cdiv(pl.cdiv(Mp, 2), sub) * sub
    tm_eff = max(sub, min(tm, tm_cap))
    grid = (pl.cdiv(Mp, tm_eff),)   # ragged last block handled by Pallas masking

    outp = pl.pallas_call(
        se_kernel,
        out_shape=jax.ShapeDtypeStruct((Mp, Cp), dtype),
        grid_spec=pltpu.PrefetchScalarGridSpec(
            num_scalar_prefetch=0,
            grid=grid,
            in_specs=[
                pl.BlockSpec((tm_eff, Cp), lambda i: (i, 0)),  # x row tile, auto-pipelined
                pl.BlockSpec((Cp, Hp), lambda i: (0, 0)),      # tiny weights, DMA'd once
                pl.BlockSpec((Hp, Cp), lambda i: (0, 0)),
            ],
            out_specs=pl.BlockSpec((tm_eff, Cp), lambda i: (i, 0)),
        ),
        compiler_params=pltpu.CompilerParams(
            dimension_semantics=("parallel",),   # shards grid across TCs on v7x
        ),
    )(xp, w1p, w2p)

    out2d = outp.reshape(Mp * pack, C)
    if rem:
        out2d = out2d[:M]
    return out2d.reshape(B, S, C)


def se_layer(x, w1, w2, *, tm=2048):
    """Convenience wrapper: prepares weights and runs the packed kernel."""
    pack = _pick_pack(x.shape[-1])
    w1p, w2p = prepare_se_weights(w1, w2, x.dtype, pack)
    return se_layer_packed(x, w1p, w2p, pack, tm=tm)


def se_layer_ref(x, w1, w2):
    """Pure-JAX reference matching the PyTorch module."""
    h = jnp.maximum(x @ w1.T, 0.0)
    y = jax.nn.sigmoid(h @ w2.T)
    return x * y


if __name__ == "__main__":
    # SELayer(channel=64, reduction=16) -> hidden = 4
    B, S, C, R = 2, 8, 64, 16
    H = C // R

    key = jax.random.PRNGKey(0)
    kx, k1, k2 = jax.random.split(key, 3)

    x = jax.random.normal(kx, (B, S, C), dtype=jnp.float32)
    # PyTorch Linear weight shapes: (out, in)
    w1 = jax.random.normal(k1, (H, C), dtype=jnp.float32) * 0.1
    w2 = jax.random.normal(k2, (C, H), dtype=jnp.float32) * 0.1

    # Weight prep hoisted out of the hot path (runs once per model).
    pack = _pick_pack(C)
    w1p, w2p = prepare_se_weights(w1, w2, x.dtype, pack)

    run = jax.jit(functools.partial(se_layer_packed, pack=pack))
    out = jax.block_until_ready(run(x, w1p, w2p))

    ref = se_layer_ref(x, w1, w2)
    assert out.shape == x.shape
    assert jnp.allclose(out, ref, atol=1e-4, rtol=1e-4), "mismatch vs reference"

    print("KERNEL_OK")
</pallas_src>

<mosaic_0001>
module attributes {stable_mosaic.version = 11 : i64} {
  func.func @se_kernel(%arg0: i32, %arg1: memref<8x128xf32, #tpu.memory_space<vmem>>, %arg2: memref<128x8xf32, #tpu.memory_space<vmem>>, %arg3: memref<8x128xf32, #tpu.memory_space<vmem>>, %arg4: memref<8x128xf32, #tpu.memory_space<vmem>>) attributes {dimension_semantics = [#tpu.dimension_semantics<parallel>], iteration_bounds = array<i64: 1>, scalar_prefetch = 0 : i64, scratch_operands = 0 : i64, tpu.core_type = #tpu.core_type<tc>, window_params = [{transform_indices = @transform_0, window_bounds = array<i64: 8, 128>}, {pipeline_mode = #tpu.pipeline_mode<synchronous>, transform_indices = @transform_1, window_bounds = array<i64: 128, 8>}, {pipeline_mode = #tpu.pipeline_mode<synchronous>, transform_indices = @transform_2, window_bounds = array<i64: 8, 128>}, {transform_indices = @transform_3, window_bounds = array<i64: 8, 128>}]} {
    %c0 = arith.constant 0 : index
    %c0_0 = arith.constant 0 : index
    %0 = vector.load %arg1[%c0, %c0_0] : memref<8x128xf32, #tpu.memory_space<vmem>>, vector<8x128xf32>
    %c0_1 = arith.constant 0 : index
    %c0_2 = arith.constant 0 : index
    %1 = vector.load %arg2[%c0_1, %c0_2] : memref<128x8xf32, #tpu.memory_space<vmem>>, vector<128x8xf32>
    %cst = arith.constant dense<0.000000e+00> : vector<8x8xf32>
    %2 = tpu.matmul %0, %1, %cst {dimension_numbers = #tpu.dot_dimension_numbers<[1], [0], [0], [1], [0, 0, 1, 1], [], []>} : vector<8x128xf32>, vector<128x8xf32>, vector<8x8xf32> -> vector<8x8xf32>
    %cst_3 = arith.constant 0.000000e+00 : f32
    %3 = vector.broadcast %cst_3 : f32 to vector<8x8xf32>
    %4 = arith.maximumf %2, %3 : vector<8x8xf32>
    %c0_4 = arith.constant 0 : index
    %c0_5 = arith.constant 0 : index
    %5 = vector.load %arg3[%c0_4, %c0_5] : memref<8x128xf32, #tpu.memory_space<vmem>>, vector<8x128xf32>
    %cst_6 = arith.constant dense<0.000000e+00> : vector<8x128xf32>
    %6 = tpu.matmul %4, %5, %cst_6 {dimension_numbers = #tpu.dot_dimension_numbers<[1], [0], [0], [1], [0, 0, 1, 1], [], []>} : vector<8x8xf32>, vector<8x128xf32>, vector<8x128xf32> -> vector<8x128xf32>
    %cst_7 = arith.constant 5.000000e-01 : f32
    %7 = vector.broadcast %cst_7 : f32 to vector<8x128xf32>
    %8 = arith.mulf %7, %6 : vector<8x128xf32>
    %9 = math.tanh %8 : vector<8x128xf32>
    %cst_8 = arith.constant 5.000000e-01 : f32
    %10 = vector.broadcast %cst_8 : f32 to vector<8x128xf32>
    %11 = arith.mulf %10, %9 : vector<8x128xf32>
    %cst_9 = arith.constant 5.000000e-01 : f32
    %12 = vector.broadcast %cst_9 : f32 to vector<8x128xf32>
    %13 = arith.addf %11, %12 : vector<8x128xf32>
    %14 = arith.mulf %0, %13 : vector<8x128xf32>
    %c0_10 = arith.constant 0 : index
    %c0_11 = arith.constant 0 : index
    %15 = vector.load %arg4[%c0_10, %c0_11] : memref<8x128xf32, #tpu.memory_space<vmem>>, vector<8x128xf32>
    tpu.vector_store %arg4[%c0_10, %c0_11], %14 {strides = array<i32>} : memref<8x128xf32, #tpu.memory_space<vmem>>, vector<8x128xf32>,
    return
  }
  func.func @transform_0(%arg0: i32) -> (i32, i32) {
    %c0_i32 = arith.constant 0 : i32
    %c0_i32_0 = arith.constant 0 : i32
    return %arg0, %c0_i32 : i32, i32
  }
  func.func @transform_1(%arg0: i32) -> (i32, i32) {
    %c0_i32 = arith.constant 0 : i32
    %c0_i32_0 = arith.constant 0 : i32
    %c0_i32_1 = arith.constant 0 : i32
    return %c0_i32, %c0_i32_0 : i32, i32
  }
  func.func @transform_2(%arg0: i32) -> (i32, i32) {
    %c0_i32 = arith.constant 0 : i32
    %c0_i32_0 = arith.constant 0 : i32
    %c0_i32_1 = arith.constant 0 : i32
    return %c0_i32, %c0_i32_0 : i32, i32
  }
  func.func @transform_3(%arg0: i32) -> (i32, i32) {
    %c0_i32 = arith.constant 0 : i32
    %c0_i32_0 = arith.constant 0 : i32
    return %arg0, %c0_i32 : i32, i32
  }
}

</mosaic_0001>

<llo_original>
// kernel: se_layer_packed.1
$region0: #{se_layer_packed.1}
  #allocation0 [shape = 'u32[]', space=smem, size = 0x4, offset = 0x4, fixed_abs, tag = 'smem constant byte address 0x4 - core index']
  #allocation1 [shape = 'u32[144,128]{1,0:T(1,128)}', space=vmem, size = 0x12000, scoped, tag = 'internal scratch']
  %s0 = inlined_call_operand.vmem [shape: f32[8,128], index: 0, kind: input, shape index: {}]
  %s1 = inlined_call_operand.vmem [shape: f32[128,8], index: 1, kind: input, shape index: {}]
  %s2 = inlined_call_operand.vmem [shape: f32[8,128], index: 2, kind: input, shape index: {}]
  %s3 = inlined_call_operand.vmem [shape: f32[8,128], index: 3, kind: output, shape index: {}]
  %s4 = sld [smem:[#allocation0]]
  $region22: #{se_layer_packed.1} parent=0
    _
  %s6 = ssub.s32 1, %s4
  %s7 = scalar_select 0, %s6, %s4
  // Predicated region
  $region2: #{se_layer_packed.1} parent=0 // pred_check
    _
  $region3: #{se_layer_packed.1} parent=0 // pred_check_branch
    %9 = sbr.rel (0) target = $region5
  $region4: #{se_layer_packed.1} parent=0 // pred_region
    _
  $region5: #{se_layer_packed.1} parent=0 // pred_fallthru
    _
  // Predicated region
  $region6: #{se_layer_packed.1} parent=0 // pred_check
    _
  $region7: #{se_layer_packed.1} parent=0 // pred_check_branch
    %11 = sbr.rel (0) target = $region9
  $region8: #{se_layer_packed.1} parent=0 // pred_region
    _
  $region9: #{se_layer_packed.1} parent=0 // pred_fallthru
    _
  // Predicated region
  $region10: #{se_layer_packed.1} parent=0 // pred_check
    _
  $region11: #{se_layer_packed.1} parent=0 // pred_check_branch
    %13 = sbr.rel (0) target = $region13
  $region12: #{se_layer_packed.1} parent=0 // pred_region
    _
  $region13: #{se_layer_packed.1} parent=0 // pred_fallthru
    _
  %v14 = vld [vmem:[%s0] sm:$0xff]
  %v15 = vld [vmem:[%s1] sm:$0xff]
  %v16 = vld [vmem:[%s1 + $0x8] sm:$0xff]
  %v17 = vld [vmem:[%s1 + $0x10] sm:$0xff]
  %v18 = vld [vmem:[%s1 + $0x18] sm:$0xff]
  %v19 = vld [vmem:[%s1 + $0x20] sm:$0xff]
  %v20 = vld [vmem:[%s1 + $0x28] sm:$0xff]
  %v21 = vld [vmem:[%s1 + $0x30] sm:$0xff]
  %v22 = vld [vmem:[%s1 + $0x38] sm:$0xff]
  %v23 = vld [vmem:[%s1 + $0x40] sm:$0xff]
  %v24 = vld [vmem:[%s1 + $0x48] sm:$0xff]
  %v25 = vld [vmem:[%s1 + $0x50] sm:$0xff]
  %v26 = vld [vmem:[%s1 + $0x58] sm:$0xff]
  %v27 = vld [vmem:[%s1 + $0x60] sm:$0xff]
  %v28 = vld [vmem:[%s1 + $0x68] sm:$0xff]
  %v29 = vld [vmem:[%s1 + $0x70] sm:$0xff]
  %v30 = vld [vmem:[%s1 + $0x78] sm:$0xff]
  %31 = vmatprep.subr.mxu0 0.0
  %32 = vmatpush1.msra.mxu0 %v15
  %33 = vmatprep.subr.mxu0 0.0
  %34 = vmatpush1.msra.mxu0 %v16
  %35 = vmatprep.subr.mxu0 0.0
  %36 = vmatpush1.msra.mxu0 %v17
  %37 = vmatprep.subr.mxu0 0.0
  %38 = vmatpush1.msra.mxu0 %v18
  %39 = vmatprep.subr.mxu0 0.0
  %40 = vmatpush1.msra.mxu0 %v19
  %41 = vmatprep.subr.mxu0 0.0
  %42 = vmatpush1.msra.mxu0 %v20
  %43 = vmatprep.subr.mxu0 0.0
  %44 = vmatpush1.msra.mxu0 %v21
  %45 = vmatprep.subr.mxu0 0.0
  %46 = vmatpush1.msra.mxu0 %v22
  %47 = vmatprep.subr.mxu0 0.0
  %48 = vmatpush1.msra.mxu0 %v23
  %49 = vmatprep.subr.mxu0 0.0
  %50 = vmatpush1.msra.mxu0 %v24
  %51 = vmatprep.subr.mxu0 0.0
  %52 = vmatpush1.msra.mxu0 %v25
  %53 = vmatprep.subr.mxu0 0.0
  %54 = vmatpush1.msra.mxu0 %v26
  %55 = vmatprep.subr.mxu0 0.0
  %56 = vmatpush1.msra.mxu0 %v27
  %57 = vmatprep.subr.mxu0 0.0
  %58 = vmatpush1.msra.mxu0 %v28
  %59 = vmatprep.subr.mxu0 0.0
  %60 = vmatpush1.msra.mxu0 %v29
  %61 = vmatprep.subr.mxu0 0.0
  %62 = vmatpush1.msra.mxu0 %v30
  %63 = vmatprep.subr.mxu0 0.0
  %64 = vmatpush1.msra.mxu0 0.0
  %65 = vmatprep.subr.mxu0 0.0
  %66 = vmatpush1.msra.mxu0 0.0
  %67 = vmatprep.subr.mxu0 0.0
  %68 = vmatpush1.msra.mxu0 0.0
  %69 = vmatprep.subr.mxu0 0.0
  %70 = vmatpush1.msra.mxu0 0.0
  %71 = vmatprep.subr.mxu0 0.0
  %72 = vmatpush1.msra.mxu0 0.0
  %73 = vmatprep.subr.mxu0 0.0
  %74 = vmatpush1.msra.mxu0 0.0
  %75 = vmatprep.subr.mxu0 0.0
  %76 = vmatpush1.msra.mxu0 0.0
  %77 = vmatprep.subr.mxu0 0.0
  %78 = vmatpush1.msra.mxu0 0.0
  %79 = vmatprep.subr.mxu0 0.0
  %80 = vmatpush1.msra.mxu0 0.0
  %81 = vmatprep.subr.mxu0 0.0
  %82 = vmatpush1.msra.mxu0 0.0
  %83 = vmatprep.subr.mxu0 0.0
  %84 = vmatpush1.msra.mxu0 0.0
  %85 = vmatprep.subr.mxu0 0.0
  %86 = vmatpush1.msra.mxu0 0.0
  %87 = vmatprep.subr.mxu0 0.0
  %88 = vmatpush1.msra.mxu0 0.0
  %89 = vmatprep.subr.mxu0 0.0
  %90 = vmatpush1.msra.mxu0 0.0
  %91 = vmatprep.subr.mxu0 0.0
  %92 = vmatpush1.msra.mxu0 0.0
  %93 = vmatprep.subr.mxu0 0.0
  %94 = vmatpush1.msra.mxu0 0.0
  %95 = vmatprep.mubr.f32.mxu0 0.0
  %96 = vmatmul.mubr.f32.gmra.mrb[0].mxu0 %v14
  %v97 = vpop.f32.mrb[0].mxu0
  %v98 = vadd.f32 0.0, %v97
  %v99 = vpop.f32.mrb[0].mxu0
  %100 = vdwg.mxu0
  %v101 = vmax.f32 %v98, 0.0
  %v102 = vld [vmem:[%s2] sm:$0xff]
  %vm103 = vcmask 64512
  %v105 = vsel %vm103, %v101, 0
  %107 = vmatprep.subr.mxu0 0.0
  %108 = vmatpush1.msra.mxu0 %v102
  %109 = vmatprep.subr.mxu0 0.0
  %110 = vmatpush1.msra.mxu0 0.0
  %111 = vmatprep.subr.mxu0 0.0
  %112 = vmatpush1.msra.mxu0 0.0
  %113 = vmatprep.subr.mxu0 0.0
  %114 = vmatpush1.msra.mxu0 0.0
  %115 = vmatprep.subr.mxu0 0.0
  %116 = vmatpush1.msra.mxu0 0.0
  %117 = vmatprep.subr.mxu0 0.0
  %118 = vmatpush1.msra.mxu0 0.0
  %119 = vmatprep.subr.mxu0 0.0
  %120 = vmatpush1.msra.mxu0 0.0
  %121 = vmatprep.subr.mxu0 0.0
  %122 = vmatpush1.msra.mxu0 0.0
  %123 = vmatprep.subr.mxu0 0.0
  %124 = vmatpush1.msra.mxu0 0.0
  %125 = vmatprep.subr.mxu0 0.0
  %126 = vmatpush1.msra.mxu0 0.0
  %127 = vmatprep.subr.mxu0 0.0
  %128 = vmatpush1.msra.mxu0 0.0
  %129 = vmatprep.subr.mxu0 0.0
  %130 = vmatpush1.msra.mxu0 0.0
  %131 = vmatprep.subr.mxu0 0.0
  %132 = vmatpush1.msra.mxu0 0.0
  %133 = vmatprep.subr.mxu0 0.0
  %134 = vmatpush1.msra.mxu0 0.0
  %135 = vmatprep.subr.mxu0 0.0
  %136 = vmatpush1.msra.mxu0 0.0
  %137 = vmatprep.subr.mxu0 0.0
  %138 = vmatpush1.msra.mxu0 0.0
  %139 = vmatprep.subr.mxu0 0.0
  %140 = vmatpush1.msra.mxu0 0.0
  %141 = vmatprep.subr.mxu0 0.0
  %142 = vmatpush1.msra.mxu0 0.0
  %143 = vmatprep.subr.mxu0 0.0
  %144 = vmatpush1.msra.mxu0 0.0
  %145 = vmatprep.subr.mxu0 0.0
  %146 = vmatpush1.msra.mxu0 0.0
  %147 = vmatprep.subr.mxu0 0.0
  %148 = vmatpush1.msra.mxu0 0.0
  %149 = vmatprep.subr.mxu0 0.0
  %150 = vmatpush1.msra.mxu0 0.0
  %151 = vmatprep.subr.mxu0 0.0
  %152 = vmatpush1.msra.mxu0 0.0
  %153 = vmatprep.subr.mxu0 0.0
  %154 = vmatpush1.msra.mxu0 0.0
  %155 = vmatprep.subr.mxu0 0.0
  %156 = vmatpush1.msra.mxu0 0.0
  %157 = vmatprep.subr.mxu0 0.0
  %158 = vmatpush1.msra.mxu0 0.0
  %159 = vmatprep.subr.mxu0 0.0
  %160 = vmatpush1.msra.mxu0 0.0
  %161 = vmatprep.subr.mxu0 0.0
  %162 = vmatpush1.msra.mxu0 0.0
  %163 = vmatprep.subr.mxu0 0.0
  %164 = vmatpush1.msra.mxu0 0.0
  %165 = vmatprep.subr.mxu0 0.0
  %166 = vmatpush1.msra.mxu0 0.0
  %167 = vmatprep.subr.mxu0 0.0
  %168 = vmatpush1.msra.mxu0 0.0
  %169 = vmatprep.subr.mxu0 0.0
  %170 = vmatpush1.msra.mxu0 0.0
  %171 = vmatprep.mubr.f32.mxu0 0.0
  %172 = vmatmul.mubr.f32.gmra.mrb[0].mxu0 %v105
  %v173 = vpop.f32.mrb[0].mxu0
  %v174 = vadd.f32 0.0, %v173
  %v175 = vpop.f32.mrb[0].mxu0
  %176 = vdwg.mxu0
  %v177 = vmul.f32 %v174, 0.5
  %v178 = vtanh.pop %v177
  %v179 = vmul.f32 %v178, 0.5
  %v180 = vadd.f32 %v179, 0.5
  %v181 = vmul.f32 %v14, %v180
  %182 = vst [vmem:[%s3] sm:$0xff] %v181
  // Predicated region
  $region14: #{se_layer_packed.1} parent=0 // pred_check
    _
  $region15: #{se_layer_packed.1} parent=0 // pred_check_branch
    %184 = sbr.rel (0) target = $region17
  $region16: #{se_layer_packed.1} parent=0 // pred_region
    _
  $region17: #{se_layer_packed.1} parent=0 // pred_fallthru
    _
  // Predicated region
  $region18: #{se_layer_packed.1} parent=0 // pred_check
    _
  $region19: #{se_layer_packed.1} parent=0 // pred_check_branch
    %186 = sbr.rel (0) target = $region21
  $region20: #{se_layer_packed.1} parent=0 // pred_region
    _
  $region21: #{se_layer_packed.1} parent=0 // pred_fallthru
    _

</llo_original>
